<compile_context>
chip_gen: v7x
topology: tpu7x:2x2x1
jax: 0.10.0
libtpu: 0.0.40
codegen_flags: <defaults>
</compile_context>

<pallas_src>
import numpy as np
import jax
import jax.numpy as jnp
from jax.experimental import pallas as pl
from jax.experimental.pallas import tpu as pltpu


def _masked_linear_kernel(x_ref, w_ref, b_ref, o_ref):
    """One (tm, tn) f32 output tile, accumulated in place over the K grid axis."""
    k = pl.program_id(2)

    @pl.when(k == 0)
    def _():
        # Initialize the VMEM-resident output tile with the broadcast bias:
        # no scratch accumulator, no finalize add.
        o_ref[...] = jnp.broadcast_to(b_ref[...], o_ref.shape).astype(o_ref.dtype)

    # Cast x to bf16 on the VPU (no-op if the wrapper already fed bf16), then
    # MXU matmul with f32 accumulation directly into the resident output block.
    x = x_ref[...].astype(jnp.bfloat16)
    o_ref[...] += jnp.dot(x, w_ref[...], preferred_element_type=jnp.float32)


def _round_up(a, m):
    return ((a + m - 1) // m) * m


def _vmem_limit_bytes():
    """Generation-aware scoped-VMEM limit (~48 MiB on v7x, ~96 MiB on v5e/v6e)."""
    phys = 64 * 1024 * 1024  # v7x-safe default (64 MiB per TensorCore)
    try:
        phys = int(pltpu.get_tpu_info().vmem_capacity_bytes)
    except Exception:
        pass
    return min(phys * 3 // 4, 100 * 1024 * 1024)


def _pick_tiles(M, K, N, vmem_limit):
    """Pick (tm, tn, tk): one M block when M is small (weight streamed once),
    then grow tn/tk (256-aligned candidates) to fill ~85% of the VMEM budget."""
    Mp = _round_up(M, 16)      # 16-row bf16 sublane pack
    Kp = _round_up(K, 128)
    Np = _round_up(N, 128)

    # Small-to-moderate M: cover all rows with one i block so the dominant
    # (K, N) weight operand is read from HBM exactly once.
    tm = Mp if Mp <= 512 else 512

    budget = int(vmem_limit * 0.85)   # headroom for compiler-internal scratch

    def footprint(tm_, tn_, tk_):
        x_t = tm_ * tk_ * 4 * 2       # x tile (budgeted at f32), double-buffered
        w_t = tk_ * tn_ * 2 * 2       # masked weight tile, bf16, double-buffered
        o_t = tm_ * tn_ * 4 * 2       # resident f32 output tile (+ writeback buffer)
        b_t = tn_ * 4 * 2             # bias tile
        return x_t + w_t + o_t + b_t

    tn, tk = min(128, Np), min(128, Kp)
    found = False
    for tn_c in (2048, 1024, 512, 256, 128):
        tn_try = min(tn_c, Np)
        for tk_c in (2048, 1024, 512, 256, 128):
            tk_try = min(tk_c, Kp)
            if footprint(tm, tn_try, tk_try) <= budget:
                tn, tk = tn_try, tk_try
                found = True
                break
        if found:
            break

    # v7x has 2 TensorCores sharded over the "parallel" grid axes: keep at least
    # two (i, j) output blocks whenever N allows so both cores get work.
    if (_round_up(M, tm) // tm) == 1 and (_round_up(N, tn) // tn) == 1 and Np >= 256:
        tn = _round_up(Np // 2, 128)

    return tm, tn, tk


def masked_linear(x, weight, mask, bias, *, tile_m=None, tile_n=None, tile_k=None):
    """x: (M, K) f32, weight/mask: (K, N) f32, bias: (N,) f32 -> (M, N) f32.

    Run under jax.jit so the mask fold / casts / pads fuse into one pass.
    """
    M, K = x.shape
    Kw, N = weight.shape
    assert K == Kw and mask.shape == (K, N) and bias.shape == (N,)

    vmem_limit = _vmem_limit_bytes()
    tm_a, tn_a, tk_a = _pick_tiles(M, K, N, vmem_limit)
    tm = tile_m if tile_m is not None else tm_a
    tn = tile_n if tile_n is not None else tn_a
    tk = tile_k if tile_k is not None else tk_a

    Mp = _round_up(M, tm)
    Kp = _round_up(K, tk)
    Np = _round_up(N, tn)
    n_j = Np // tn

    # Fold the static mask into the weight (identical math to the module's
    # per-forward `weight * mask`); only the MXU weight operand is cast to bf16.
    w_masked = (weight.astype(jnp.float32) * mask.astype(jnp.float32)).astype(jnp.bfloat16)
    if (Kp, Np) != (K, N):
        w_masked = jnp.pad(w_masked, ((0, Kp - K), (0, Np - N)))

    # x: when it is re-streamed at most twice (<=2 j blocks), feed f32 and let the
    # kernel cast on the VPU (saves a wrapper-side HBM cast pass); otherwise cast
    # once here so the re-streamed tiles are half-width.
    x_in = x.astype(jnp.float32) if n_j <= 2 else x.astype(jnp.bfloat16)
    if (Mp, Kp) != (M, K):
        x_in = jnp.pad(x_in, ((0, Mp - M), (0, Kp - K)))

    bias2d = bias.astype(jnp.float32).reshape(1, N)
    if Np != N:
        bias2d = jnp.pad(bias2d, ((0, 0), (0, Np - N)))

    grid = (Mp // tm, Np // tn, Kp // tk)

    out = pl.pallas_call(
        _masked_linear_kernel,
        out_shape=jax.ShapeDtypeStruct((Mp, Np), jnp.float32),
        grid_spec=pltpu.PrefetchScalarGridSpec(
            num_scalar_prefetch=0,
            grid=grid,
            in_specs=[
                pl.BlockSpec((tm, tk), lambda i, j, k: (i, k)),   # x tile
                pl.BlockSpec((tk, tn), lambda i, j, k: (k, j)),   # masked weight tile (bf16)
                pl.BlockSpec((1, tn), lambda i, j, k: (0, j)),    # bias tile (f32)
            ],
            out_specs=pl.BlockSpec((tm, tn), lambda i, j, k: (i, j)),
        ),
        compiler_params=pltpu.CompilerParams(
            dimension_semantics=("parallel", "parallel", "arbitrary"),
            vmem_limit_bytes=vmem_limit,
        ),
    )(x_in, w_masked, bias2d)

    return out[:M, :N]


def make_params(key, in_features, out_features, use_bias, small_mask):
    """Deterministic parameter construction mirroring MaskedLinear.__init__."""
    # kaiming_uniform_(weight, a=sqrt(5)) on an (in, out) tensor:
    # PyTorch fan_in of a 2D tensor = dim 1 = out_features here.
    a = np.sqrt(5.0)
    gain = np.sqrt(2.0 / (1.0 + a * a))
    fan_in = out_features
    bound = gain * np.sqrt(3.0 / fan_in)
    weight = jax.random.uniform(key, (in_features, out_features),
                                minval=-bound, maxval=bound, dtype=jnp.float32)

    # set_mask: block-repeat the small numpy mask up to (in_features, out_features)
    orig_r, orig_c = small_mask.shape
    mask = np.repeat(np.repeat(small_mask, in_features // orig_r, axis=0),
                     out_features // orig_c, axis=1).astype(np.float32)
    mask = jnp.asarray(mask)

    bias_val = 0.01 if use_bias else 0.0
    bias = jnp.full((out_features,), bias_val, dtype=jnp.float32)
    return weight, mask, bias


if __name__ == "__main__":
    # Small demo shapes; the tile-picking logic above is what matters at real sizes.
    batch = 16
    in_features = 256
    out_features = 128
    use_bias = True

    key = jax.random.PRNGKey(0)
    kx, kw = jax.random.split(key)

    # Small structured mask (4x4 block pattern), repeated to the full weight shape.
    small_mask = np.tril(np.ones((4, 4), dtype=np.float32))
    weight, mask, bias = make_params(kw, in_features, out_features, use_bias, small_mask)
    x = jax.random.normal(kx, (batch, in_features), dtype=jnp.float32)

    # jit the wrapper so the mask fold / cast / pad fuse with the pallas_call.
    fwd = jax.jit(masked_linear, static_argnames=("tile_m", "tile_n", "tile_k"))

    # 1) Auto-picked tiles (single K step at these small shapes).
    out = jax.block_until_ready(fwd(x, weight, mask, bias))
    # 2) Forced tile_k=128 to exercise the multi-step K accumulation path.
    out_k = jax.block_until_ready(fwd(x, weight, mask, bias, tile_k=128))

    # Reference check in plain JAX (same math as the PyTorch forward).
    # bf16 MXU operands -> loosened tolerance vs the f32 reference.
    ref = x @ (weight * mask) + bias
    np.testing.assert_allclose(np.asarray(out), np.asarray(ref), rtol=2e-2, atol=2e-2)
    np.testing.assert_allclose(np.asarray(out_k), np.asarray(ref), rtol=2e-2, atol=2e-2)

    print("KERNEL_OK")
</pallas_src>

<mosaic_0001>
module attributes {stable_mosaic.version = 11 : i64} {
  func.func @_masked_linear_kernel(%arg0: i32, %arg1: i32, %arg2: i32, %arg3: memref<16x256xf32, #tpu.memory_space<vmem>>, %arg4: memref<256x128xbf16, #tpu.memory_space<vmem>>, %arg5: memref<1x128xf32, #tpu.memory_space<vmem>>, %arg6: memref<16x128xf32, #tpu.memory_space<vmem>>) attributes {dimension_semantics = [#tpu.dimension_semantics<parallel>, #tpu.dimension_semantics<parallel>, #tpu.dimension_semantics<arbitrary>], iteration_bounds = array<i64: 1, 1, 1>, scalar_prefetch = 0 : i64, scratch_operands = 0 : i64, tpu.core_type = #tpu.core_type<tc>, window_params = [{transform_indices = @transform_0, window_bounds = array<i64: 16, 256>}, {transform_indices = @transform_1, window_bounds = array<i64: 256, 128>}, {transform_indices = @transform_2, window_bounds = array<i64: 1, 128>}, {transform_indices = @transform_3, window_bounds = array<i64: 16, 128>}]} {
    %c0_i32 = arith.constant 0 : i32
    %0 = arith.cmpi eq, %arg2, %c0_i32 : i32
    %1 = arith.extui %0 : i1 to i32
    %c0_i32_0 = arith.constant 0 : i32
    %2 = arith.cmpi ne, %1, %c0_i32_0 : i32
    scf.if %2 {
      %c0_8 = arith.constant 0 : index
      %c0_9 = arith.constant 0 : index
      %10 = vector.load %arg5[%c0_8, %c0_9] : memref<1x128xf32, #tpu.memory_space<vmem>>, vector<1x128xf32>
      %11 = vector.shape_cast %10 : vector<1x128xf32> to vector<1x128xf32>
      %12 = vector.broadcast %11 : vector<1x128xf32> to vector<16x128xf32>
      %c0_10 = arith.constant 0 : index
      %c0_11 = arith.constant 0 : index
      %13 = vector.load %arg6[%c0_10, %c0_11] : memref<16x128xf32, #tpu.memory_space<vmem>>, vector<16x128xf32>
      tpu.vector_store %arg6[%c0_10, %c0_11], %12 {strides = array<i32>} : memref<16x128xf32, #tpu.memory_space<vmem>>, vector<16x128xf32>,
    } else {
    }
    %c0 = arith.constant 0 : index
    %c0_1 = arith.constant 0 : index
    %3 = vector.load %arg3[%c0, %c0_1] : memref<16x256xf32, #tpu.memory_space<vmem>>, vector<16x256xf32>
    %4 = arith.truncf %3 : vector<16x256xf32> to vector<16x256xbf16>
    %c0_2 = arith.constant 0 : index
    %c0_3 = arith.constant 0 : index
    %5 = vector.load %arg6[%c0_2, %c0_3] : memref<16x128xf32, #tpu.memory_space<vmem>>, vector<16x128xf32>
    %c0_4 = arith.constant 0 : index
    %c0_5 = arith.constant 0 : index
    %6 = vector.load %arg4[%c0_4, %c0_5] : memref<256x128xbf16, #tpu.memory_space<vmem>>, vector<256x128xbf16>
    %cst = arith.constant dense<0.000000e+00> : vector<16x128xf32>
    %7 = tpu.matmul %4, %6, %cst {dimension_numbers = #tpu.dot_dimension_numbers<[1], [0], [0], [1], [0, 0, 1, 1], [], []>} : vector<16x256xbf16>, vector<256x128xbf16>, vector<16x128xf32> -> vector<16x128xf32>
    %8 = arith.addf %5, %7 : vector<16x128xf32>
    %c0_6 = arith.constant 0 : index
    %c0_7 = arith.constant 0 : index
    %9 = vector.load %arg6[%c0_6, %c0_7] : memref<16x128xf32, #tpu.memory_space<vmem>>, vector<16x128xf32>
    tpu.vector_store %arg6[%c0_6, %c0_7], %8 {strides = array<i32>} : memref<16x128xf32, #tpu.memory_space<vmem>>, vector<16x128xf32>,
    return
  }
  func.func @transform_0(%arg0: i32, %arg1: i32, %arg2: i32) -> (i32, i32) {
    %c0_i32 = arith.constant 0 : i32
    return %arg0, %arg2 : i32, i32
  }
  func.func @transform_1(%arg0: i32, %arg1: i32, %arg2: i32) -> (i32, i32) {
    %c0_i32 = arith.constant 0 : i32
    return %arg2, %arg1 : i32, i32
  }
  func.func @transform_2(%arg0: i32, %arg1: i32, %arg2: i32) -> (i32, i32) {
    %c0_i32 = arith.constant 0 : i32
    %c0_i32_0 = arith.constant 0 : i32
    return %c0_i32, %arg1 : i32, i32
  }
  func.func @transform_3(%arg0: i32, %arg1: i32, %arg2: i32) -> (i32, i32) {
    %c0_i32 = arith.constant 0 : i32
    return %arg0, %arg1 : i32, i32
  }
}

</mosaic_0001>

<llo_original>
// kernel: masked_linear.1
$region0: #{masked_linear.1}
  #allocation0 [shape = 'u32[]', space=smem, size = 0x4, offset = 0x4, fixed_abs, tag = 'smem constant byte address 0x4 - core index']
  #allocation1 [shape = 'u32[144,128]{1,0:T(1,128)}', space=vmem, size = 0x12000, scoped, tag = 'internal scratch']
  %s0 = inlined_call_operand.vmem [shape: f32[16,256], index: 0, kind: input, shape index: {}]
  %s1 = inlined_call_operand.vmem [shape: bf16[256,128], index: 1, kind: input, shape index: {}]
  %s2 = inlined_call_operand.vmem [shape: f32[1,128], index: 2, kind: input, shape index: {}]
  %s3 = inlined_call_operand.hbm [shape: f32[16,128], index: 3, kind: output, shape index: {}]
  %s4 = sld [smem:[#allocation0]]
  $region26: #{masked_linear.1} parent=0
    _
  %s6 = ssub.s32 1, %s4
  %s7 = scalar_select 0, %s6, %s4
  $region1: #{masked_linear.1} parent=0
    #allocation2 [shape = 'u8[8192]{0}', space=vmem, size = 0x2000, scoped, tag = 'output window, operand 0, single buffered']
    #allocation3 [shape = 's32[1]{0}', space=sflag, size = 0x4, scoped, tag = 'scoped memory for masked_linear.1']
    %8 = vsyncpa [#allocation3], 0
    // Predicated region
    $region2: #{masked_linear.1} parent=1 // pred_check
      _
    $region3: #{masked_linear.1} parent=1 // pred_check_branch
      %10 = sbr.rel (0) target = $region5
    $region4: #{masked_linear.1} parent=1 // pred_region
      _
    $region5: #{masked_linear.1} parent=1 // pred_fallthru
      _
    // Predicated region
    $region6: #{masked_linear.1} parent=1 // pred_check
      _
    $region7: #{masked_linear.1} parent=1 // pred_check_branch
      %12 = sbr.rel (0) target = $region9
    $region8: #{masked_linear.1} parent=1 // pred_region
      _
    $region9: #{masked_linear.1} parent=1 // pred_fallthru
      _
    // Predicated region
    $region10: #{masked_linear.1} parent=1 // pred_check
      _
    $region11: #{masked_linear.1} parent=1 // pred_check_branch
      %14 = sbr.rel (0) target = $region13
    $region12: #{masked_linear.1} parent=1 // pred_region
      _
    $region13: #{masked_linear.1} parent=1 // pred_fallthru
      _
    %p16 = scmp.eq.s32.totalorder 0, 0
    // Predicated region
    $region14: #{masked_linear.1} parent=1 // pred_check
      %p17 = pneg %p16
    $region15: #{masked_linear.1} parent=1 // pred_check_branch
      %19 = sbr.rel (%p17) target = $region17
    $region16: #{masked_linear.1} parent=1 // pred_region
      %v20 = vld [vmem:[%s2] sm:$0x1]
      %v22 = vlaneseq
      %v23 = vshrl.u32 %v22, 7
      %v24 = vsub.s32 0, %v23
      %v25 = vrot.slane %v20, %v24
      %27 = vst [vmem:[#allocation2] sm:$0xff] %v25
      %28 = vst [vmem:[#allocation2 + $0x8] sm:$0xff] %v25
    $region17: #{masked_linear.1} parent=1 // pred_fallthru
      _
    %v29 = vld [vmem:[%s0] sm:$0xff]
    %v30 = vld [vmem:[%s0 + $0x8] sm:$0xff]
    %v31 = vld [vmem:[%s0 + $0x10] sm:$0xff]
    %v32 = vld [vmem:[%s0 + $0x18] sm:$0xff]
    %v33 = vpack.c.bf16 %v31, %v29
    %v34 = vpack.c.bf16 %v32, %v30
    %v35 = vld [vmem:[#allocation2] sm:$0xff]
    %v36 = vld [vmem:[#allocation2 + $0x8] sm:$0xff]
    %v37 = vld [vmem:[%s1] sm:$0xf]
    %v38 = vld [vmem:[%s1 + $0x4] sm:$0xf]
    %v39 = vld [vmem:[%s1 + $0x8] sm:$0xf]
    %v40 = vld [vmem:[%s1 + $0xc] sm:$0xf]
    %v41 = vld [vmem:[%s1 + $0x10] sm:$0xf]
    %v42 = vld [vmem:[%s1 + $0x14] sm:$0xf]
    %v43 = vld [vmem:[%s1 + $0x18] sm:$0xf]
    %v44 = vld [vmem:[%s1 + $0x1c] sm:$0xf]
    %v45 = vld [vmem:[%s1 + $0x20] sm:$0xf]
    %v46 = vld [vmem:[%s1 + $0x24] sm:$0xf]
    %v47 = vld [vmem:[%s1 + $0x28] sm:$0xf]
    %v48 = vld [vmem:[%s1 + $0x2c] sm:$0xf]
    %v49 = vld [vmem:[%s1 + $0x30] sm:$0xf]
    %v50 = vld [vmem:[%s1 + $0x34] sm:$0xf]
    %v51 = vld [vmem:[%s1 + $0x38] sm:$0xf]
    %v52 = vld [vmem:[%s1 + $0x3c] sm:$0xf]
    %v53 = vld [vmem:[%s1 + $0x40] sm:$0xf]
    %v54 = vld [vmem:[%s1 + $0x44] sm:$0xf]
    %v55 = vld [vmem:[%s1 + $0x48] sm:$0xf]
    %v56 = vld [vmem:[%s1 + $0x4c] sm:$0xf]
    %v57 = vld [vmem:[%s1 + $0x50] sm:$0xf]
    %v58 = vld [vmem:[%s1 + $0x54] sm:$0xf]
    %v59 = vld [vmem:[%s1 + $0x58] sm:$0xf]
    %v60 = vld [vmem:[%s1 + $0x5c] sm:$0xf]
    %v61 = vld [vmem:[%s1 + $0x60] sm:$0xf]
    %v62 = vld [vmem:[%s1 + $0x64] sm:$0xf]
    %v63 = vld [vmem:[%s1 + $0x68] sm:$0xf]
    %v64 = vld [vmem:[%s1 + $0x6c] sm:$0xf]
    %v65 = vld [vmem:[%s1 + $0x70] sm:$0xf]
    %v66 = vld [vmem:[%s1 + $0x74] sm:$0xf]
    %v67 = vld [vmem:[%s1 + $0x78] sm:$0xf]
    %v68 = vld [vmem:[%s1 + $0x7c] sm:$0xf]
    %v101 = vunpack.c.l.b16 %v37
    %v102 = vunpack.c.l.b16 %v38
    %v103 = vunpack.c.l.b16 %v39
    %v104 = vunpack.c.l.b16 %v40
    %v105 = vunpack.c.l.b16 %v41
    %v106 = vunpack.c.l.b16 %v42
    %v107 = vunpack.c.l.b16 %v43
    %v108 = vunpack.c.l.b16 %v44
    %v109 = vunpack.c.l.b16 %v45
    %v110 = vunpack.c.l.b16 %v46
    %v111 = vunpack.c.l.b16 %v47
    %v112 = vunpack.c.l.b16 %v48
    %v113 = vunpack.c.l.b16 %v49
    %v114 = vunpack.c.l.b16 %v50
    %v115 = vunpack.c.l.b16 %v51
    %v116 = vunpack.c.l.b16 %v52
    %v117 = vunpack.c.l.b16 %v53
    %v118 = vunpack.c.l.b16 %v54
    %v119 = vunpack.c.l.b16 %v55
    %v120 = vunpack.c.l.b16 %v56
    %v121 = vunpack.c.l.b16 %v57
    %v122 = vunpack.c.l.b16 %v58
    %v123 = vunpack.c.l.b16 %v59
    %v124 = vunpack.c.l.b16 %v60
    %v125 = vunpack.c.l.b16 %v61
    %v126 = vunpack.c.l.b16 %v62
    %v127 = vunpack.c.l.b16 %v63
    %v128 = vunpack.c.l.b16 %v64
    %v129 = vunpack.c.l.b16 %v65
    %v130 = vunpack.c.l.b16 %v66
    %v131 = vunpack.c.l.b16 %v67
    %v132 = vunpack.c.l.b16 %v68
    %v133 = vpack.c.b16 %v102, %v101
    %v134 = vpack.c.b16 %v104, %v103
    %v135 = vpack.c.b16 %v106, %v105
    %v136 = vpack.c.b16 %v108, %v107
    %v137 = vpack.c.b16 %v110, %v109
    %v138 = vpack.c.b16 %v112, %v111
    %v139 = vpack.c.b16 %v114, %v113
    %v140 = vpack.c.b16 %v116, %v115
    %v141 = vpack.c.b16 %v118, %v117
    %v142 = vpack.c.b16 %v120, %v119
    %v143 = vpack.c.b16 %v122, %v121
    %v144 = vpack.c.b16 %v124, %v123
    %v145 = vpack.c.b16 %v126, %v125
    %v146 = vpack.c.b16 %v128, %v127
    %v147 = vpack.c.b16 %v130, %v129
    %v148 = vpack.c.b16 %v132, %v131
    %165 = vmatprep.subr.bf16.mxu0 0
    %166 = vmatpush1.bf16.msra.mxu0 %v133
    %167 = vmatprep.subr.bf16.mxu0 0
    %168 = vmatpush1.bf16.msra.mxu0 %v134
    %169 = vmatprep.subr.bf16.mxu0 0
    %170 = vmatpush1.bf16.msra.mxu0 %v135
    %171 = vmatprep.subr.bf16.mxu0 0
    %172 = vmatpush1.bf16.msra.mxu0 %v136
    %173 = vmatprep.subr.bf16.mxu0 0
    %174 = vmatpush1.bf16.msra.mxu0 %v137
    %175 = vmatprep.subr.bf16.mxu0 0
    %176 = vmatpush1.bf16.msra.mxu0 %v138
    %177 = vmatprep.subr.bf16.mxu0 0
    %178 = vmatpush1.bf16.msra.mxu0 %v139
    %179 = vmatprep.subr.bf16.mxu0 0
    %180 = vmatpush1.bf16.msra.mxu0 %v140
    %181 = vmatprep.subr.bf16.mxu0 0
    %182 = vmatpush1.bf16.msra.mxu0 %v141
    %183 = vmatprep.subr.bf16.mxu0 0
    %184 = vmatpush1.bf16.msra.mxu0 %v142
    %185 = vmatprep.subr.bf16.mxu0 0
    %186 = vmatpush1.bf16.msra.mxu0 %v143
    %187 = vmatprep.subr.bf16.mxu0 0
    %188 = vmatpush1.bf16.msra.mxu0 %v144
    %189 = vmatprep.subr.bf16.mxu0 0
    %190 = vmatpush1.bf16.msra.mxu0 %v145
    %191 = vmatprep.subr.bf16.mxu0 0
    %192 = vmatpush1.bf16.msra.mxu0 %v146
    %193 = vmatprep.subr.bf16.mxu0 0
    %194 = vmatpush1.bf16.msra.mxu0 %v147
    %195 = vmatprep.subr.bf16.mxu0 0
    %196 = vmatpush1.bf16.msra.mxu0 %v148
    %197 = vmatprep.mubr.bf16.mxu0 %v34
    %198 = vmatmul.mubr.bf16.gmra.mrb[0].mxu0 %v33
    %v199 = vpop.f32.mrb[0].mxu0
    %v200 = vadd.f32 0.0, %v199
    %v201 = vpop.f32.mrb[0].mxu0
    %v202 = vpop.f32.mrb[0].mxu0
    %v203 = vadd.f32 0.0, %v202
    %v204 = vpop.f32.mrb[0].mxu0
    %205 = vdwg.mxu0
    %v206 = vadd.f32 %v35, %v200
    %v207 = vadd.f32 %v36, %v203
    %208 = vst [vmem:[#allocation2] sm:$0xff] %v206
    %209 = vst [vmem:[#allocation2 + $0x8] sm:$0xff] %v207
    // Predicated region
    $region18: #{masked_linear.1} parent=1 // pred_check
      _
    $region19: #{masked_linear.1} parent=1 // pred_check_branch
      %211 = sbr.rel (0) target = $region21
    $region20: #{masked_linear.1} parent=1 // pred_region
      %s213 = ssub.s32 256, 256
      %214 = vsyncadd [#allocation3], %s213
      %s215 = sshll.u32 [#allocation2], 4
      %s216 = int_to_ptr.vmem [resolvable:$true] %s215
      %221 = dma.vmem_to_hbm [thread:$0]  %s216, 256, %s3, [#allocation3], 128, 128, 8
    $region21: #{masked_linear.1} parent=1 // pred_fallthru
      _
    // Predicated region
    $region22: #{masked_linear.1} parent=1 // pred_check
      _
    $region23: #{masked_linear.1} parent=1 // pred_check_branch
      %223 = sbr.rel (0) target = $region25
    $region24: #{masked_linear.1} parent=1 // pred_region
      %224 = dma.done [#allocation3], 256
    $region25: #{masked_linear.1} parent=1 // pred_fallthru
      _
    %225 = vsyncpa [#allocation3], 1

</llo_original>
